<compile_context>
chip_gen: v7x
topology: tpu7x:2x2x1
jax: 0.10.0
libtpu: 0.0.40
codegen_flags: <defaults>
</compile_context>

<pallas_src>
import functools

import jax
import jax.numpy as jnp
from jax.experimental import pallas as pl
from jax.experimental.pallas import tpu as pltpu


def _round_up(x, m):
    return ((x + m - 1) // m) * m


def mlp_softmax_kernel(x_ref, w1_ref, b1_ref, w2_ref, b2_ref, o_ref):
    # fc1: bf16 MXU matmul with f32 accumulation, then f32 bias + ReLU.
    h = jnp.dot(x_ref[...], w1_ref[...], preferred_element_type=jnp.float32)
    h = jnp.maximum(h + b1_ref[...], 0.0)
    # fc2: cast activations down for the MXU, accumulate in f32.
    logits = jnp.dot(h.astype(w2_ref.dtype), w2_ref[...],
                     preferred_element_type=jnp.float32) + b2_ref[...]
    # Numerically-stable softmax over the class axis, all-f32 epilogue.
    # Exact divide: pl.reciprocal(approx=True) carries ~2^-12 rel. error which
    # broke the tight correctness check; one divide per row is negligible.
    m = jnp.max(logits, axis=-1, keepdims=True)
    e = jnp.exp(logits - m)
    denom = jnp.sum(e, axis=-1, keepdims=True)
    o_ref[...] = (e / denom).astype(o_ref.dtype)


@functools.partial(jax.jit, static_argnames=("tm", "matmul_dtype"))
def deep_learning_model(x, w1, b1, w2, b2, *, tm=1024, matmul_dtype=jnp.bfloat16):
    """x: (B, D) f32; w1: (D, H); b1: (1, H); w2: (H, C); b2: (1, C).
    Weights are stored pre-transposed (in, out): x @ W == PyTorch x @ W.T."""
    B, D = x.shape
    H = w1.shape[1]
    C = w2.shape[1]
    in_size = jnp.dtype(matmul_dtype).itemsize

    # ---- batch tile selection (all static Python ints) --------------------
    TM = min(tm, _round_up(B, 8))                 # multiple of 8 (f32 sublanes)
    if B >= 16 and pl.cdiv(B, TM) < 2:
        # Keep >= 2 grid steps so the "parallel" batch axis can shard across
        # both TensorCores on v7x (neutral on v5e/v6e).
        TM = _round_up(pl.cdiv(B, 2), 8)
    # VMEM budget: double-buffered x + out tiles + resident weights, kept well
    # under the 32 MiB scoped default (also safe for v7x's 64 MiB physical).
    resident = (D * H + H * C) * in_size + (H + C) * 4
    per_row = D * in_size + C * 4
    budget = 24 << 20
    max_rows = max(8, (budget - resident) // (2 * per_row))
    TM = max(8, min(TM, (max_rows // 8) * 8))
    grid = pl.cdiv(B, TM)   # ragged last tile handled by Pallas; rows independent

    return pl.pallas_call(
        mlp_softmax_kernel,
        out_shape=jax.ShapeDtypeStruct((B, C), jnp.float32),
        grid=(grid,),
        in_specs=[
            # x tile marches over the batch (double-buffered by the pipeline).
            pl.BlockSpec((TM, D), lambda i: (i, 0)),
            pl.BlockSpec((D, H), lambda i: (0, 0)),   # w1: VMEM-resident
            pl.BlockSpec((1, H), lambda i: (0, 0)),   # b1
            pl.BlockSpec((H, C), lambda i: (0, 0)),   # w2
            pl.BlockSpec((1, C), lambda i: (0, 0)),   # b2
        ],
        out_specs=pl.BlockSpec((TM, C), lambda i: (i, 0)),
        compiler_params=pltpu.CompilerParams(
            dimension_semantics=("parallel",),
        ),
    )(
        x.astype(matmul_dtype),
        w1.astype(matmul_dtype),
        b1.astype(jnp.float32),
        w2.astype(matmul_dtype),
        b2.astype(jnp.float32),
    )


def init_params(key, input_dim, hidden_dim, output_dim):
    """Deterministic init mimicking nn.Linear's uniform(-1/sqrt(fan_in), +1/sqrt(fan_in))."""
    k1, k2, k3, k4 = jax.random.split(key, 4)
    bound1 = 1.0 / jnp.sqrt(input_dim)
    bound2 = 1.0 / jnp.sqrt(hidden_dim)
    # stored pre-transposed: (in, out)
    w1 = jax.random.uniform(k1, (input_dim, hidden_dim), jnp.float32, -bound1, bound1)
    b1 = jax.random.uniform(k2, (1, hidden_dim), jnp.float32, -bound1, bound1)
    w2 = jax.random.uniform(k3, (hidden_dim, output_dim), jnp.float32, -bound2, bound2)
    b2 = jax.random.uniform(k4, (1, output_dim), jnp.float32, -bound2, bound2)
    return w1, b1, w2, b2


if __name__ == "__main__":
    batch = 8
    input_dim = 32      # stand-in for the X_train feature dim
    hidden_dim = 128
    output_dim = 2

    key = jax.random.PRNGKey(0)
    kx, kp = jax.random.split(key)
    x = jax.random.normal(kx, (batch, input_dim), jnp.float32)
    w1, b1, w2, b2 = init_params(kp, input_dim, hidden_dim, output_dim)

    out = deep_learning_model(x, w1, b1, w2, b2)
    out = jax.block_until_ready(out)
    assert out.shape == (batch, output_dim)

    # Reference matching the kernel's numerics: bf16 matmul inputs, f32
    # accumulation, f32 epilogue.
    xb, w1b, w2b = (x.astype(jnp.bfloat16), w1.astype(jnp.bfloat16),
                    w2.astype(jnp.bfloat16))
    h_ref = jnp.maximum(
        jnp.dot(xb, w1b, preferred_element_type=jnp.float32) + b1, 0.0)
    logits_ref = jnp.dot(h_ref.astype(jnp.bfloat16), w2b,
                         preferred_element_type=jnp.float32) + b2
    ref = jax.nn.softmax(logits_ref, axis=1)
    assert jnp.allclose(out, ref, atol=1e-3, rtol=1e-3)

    # Looser sanity check against the pure-f32 reference (bf16 matmul inputs
    # shift the softmax probabilities by well under 1e-2 at these scales).
    ref32 = jax.nn.softmax(jnp.maximum(x @ w1 + b1, 0.0) @ w2 + b2, axis=1)
    assert jnp.allclose(out, ref32, atol=3e-2)

    # Probabilities sum to 1 per row (exact divide in the kernel).
    assert jnp.allclose(out.sum(axis=1), 1.0, atol=1e-3)

    print("KERNEL_OK")
</pallas_src>

<mosaic_0001>
module attributes {stable_mosaic.version = 11 : i64} {
  func.func @mlp_softmax_kernel(%arg0: i32, %arg1: memref<8x32xbf16, #tpu.memory_space<vmem>>, %arg2: memref<32x128xbf16, #tpu.memory_space<vmem>>, %arg3: memref<1x128xf32, #tpu.memory_space<vmem>>, %arg4: memref<128x2xbf16, #tpu.memory_space<vmem>>, %arg5: memref<1x2xf32, #tpu.memory_space<vmem>>, %arg6: memref<8x2xf32, #tpu.memory_space<vmem>>) attributes {dimension_semantics = [#tpu.dimension_semantics<parallel>], iteration_bounds = array<i64: 1>, scalar_prefetch = 0 : i64, scratch_operands = 0 : i64, tpu.core_type = #tpu.core_type<tc>, window_params = [{transform_indices = @transform_0, window_bounds = array<i64: 8, 32>}, {pipeline_mode = #tpu.pipeline_mode<synchronous>, transform_indices = @transform_1, window_bounds = array<i64: 32, 128>}, {pipeline_mode = #tpu.pipeline_mode<synchronous>, transform_indices = @transform_2, window_bounds = array<i64: 1, 128>}, {pipeline_mode = #tpu.pipeline_mode<synchronous>, transform_indices = @transform_3, window_bounds = array<i64: 128, 2>}, {pipeline_mode = #tpu.pipeline_mode<synchronous>, transform_indices = @transform_4, window_bounds = array<i64: 1, 2>}, {transform_indices = @transform_5, window_bounds = array<i64: 8, 2>}]} {
    %c0 = arith.constant 0 : index
    %c0_0 = arith.constant 0 : index
    %0 = vector.load %arg1[%c0, %c0_0] : memref<8x32xbf16, #tpu.memory_space<vmem>>, vector<8x32xbf16>
    %c0_1 = arith.constant 0 : index
    %c0_2 = arith.constant 0 : index
    %1 = vector.load %arg2[%c0_1, %c0_2] : memref<32x128xbf16, #tpu.memory_space<vmem>>, vector<32x128xbf16>
    %cst = arith.constant dense<0.000000e+00> : vector<8x128xf32>
    %2 = tpu.matmul %0, %1, %cst {dimension_numbers = #tpu.dot_dimension_numbers<[1], [0], [0], [1], [0, 0, 1, 1], [], []>} : vector<8x32xbf16>, vector<32x128xbf16>, vector<8x128xf32> -> vector<8x128xf32>
    %c0_3 = arith.constant 0 : index
    %c0_4 = arith.constant 0 : index
    %3 = vector.load %arg3[%c0_3, %c0_4] : memref<1x128xf32, #tpu.memory_space<vmem>>, vector<1x128xf32>
    %4 = vector.broadcast %3 : vector<1x128xf32> to vector<8x128xf32>
    %5 = arith.addf %2, %4 : vector<8x128xf32>
    %cst_5 = arith.constant 0.000000e+00 : f32
    %6 = vector.broadcast %cst_5 : f32 to vector<8x128xf32>
    %7 = arith.maximumf %5, %6 : vector<8x128xf32>
    %8 = arith.truncf %7 : vector<8x128xf32> to vector<8x128xbf16>
    %c0_6 = arith.constant 0 : index
    %c0_7 = arith.constant 0 : index
    %9 = vector.load %arg4[%c0_6, %c0_7] : memref<128x2xbf16, #tpu.memory_space<vmem>>, vector<128x2xbf16>
    %cst_8 = arith.constant dense<0.000000e+00> : vector<8x2xf32>
    %10 = tpu.matmul %8, %9, %cst_8 {dimension_numbers = #tpu.dot_dimension_numbers<[1], [0], [0], [1], [0, 0, 1, 1], [], []>} : vector<8x128xbf16>, vector<128x2xbf16>, vector<8x2xf32> -> vector<8x2xf32>
    %c0_9 = arith.constant 0 : index
    %c0_10 = arith.constant 0 : index
    %11 = vector.load %arg5[%c0_9, %c0_10] : memref<1x2xf32, #tpu.memory_space<vmem>>, vector<1x2xf32>
    %12 = vector.broadcast %11 : vector<1x2xf32> to vector<8x2xf32>
    %13 = arith.addf %10, %12 : vector<8x2xf32>
    %cst_11 = arith.constant dense<0xFF800000> : vector<8xf32>
    %14 = vector.multi_reduction <maximumf>, %13, %cst_11 [1] : vector<8x2xf32> to vector<8xf32>
    %15 = vector.shape_cast %14 : vector<8xf32> to vector<8x1xf32>
    %16 = vector.broadcast %15 : vector<8x1xf32> to vector<8x2xf32>
    %17 = arith.subf %13, %16 : vector<8x2xf32>
    %18 = math.exp %17 : vector<8x2xf32>
    %cst_12 = arith.constant dense<0.000000e+00> : vector<8xf32>
    %19 = vector.multi_reduction <add>, %18, %cst_12 [1] : vector<8x2xf32> to vector<8xf32>
    %20 = vector.shape_cast %19 : vector<8xf32> to vector<8x1xf32>
    %21 = vector.broadcast %20 : vector<8x1xf32> to vector<8x2xf32>
    %22 = arith.divf %18, %21 : vector<8x2xf32>
    %c0_13 = arith.constant 0 : index
    %c0_14 = arith.constant 0 : index
    %23 = vector.load %arg6[%c0_13, %c0_14] : memref<8x2xf32, #tpu.memory_space<vmem>>, vector<8x2xf32>
    tpu.vector_store %arg6[%c0_13, %c0_14], %22 {strides = array<i32>} : memref<8x2xf32, #tpu.memory_space<vmem>>, vector<8x2xf32>,
    return
  }
  func.func @transform_0(%arg0: i32) -> (i32, i32) {
    %c0_i32 = arith.constant 0 : i32
    %c0_i32_0 = arith.constant 0 : i32
    return %arg0, %c0_i32 : i32, i32
  }
  func.func @transform_1(%arg0: i32) -> (i32, i32) {
    %c0_i32 = arith.constant 0 : i32
    %c0_i32_0 = arith.constant 0 : i32
    %c0_i32_1 = arith.constant 0 : i32
    return %c0_i32, %c0_i32_0 : i32, i32
  }
  func.func @transform_2(%arg0: i32) -> (i32, i32) {
    %c0_i32 = arith.constant 0 : i32
    %c0_i32_0 = arith.constant 0 : i32
    %c0_i32_1 = arith.constant 0 : i32
    return %c0_i32, %c0_i32_0 : i32, i32
  }
  func.func @transform_3(%arg0: i32) -> (i32, i32) {
    %c0_i32 = arith.constant 0 : i32
    %c0_i32_0 = arith.constant 0 : i32
    %c0_i32_1 = arith.constant 0 : i32
    return %c0_i32, %c0_i32_0 : i32, i32
  }
  func.func @transform_4(%arg0: i32) -> (i32, i32) {
    %c0_i32 = arith.constant 0 : i32
    %c0_i32_0 = arith.constant 0 : i32
    %c0_i32_1 = arith.constant 0 : i32
    return %c0_i32, %c0_i32_0 : i32, i32
  }
  func.func @transform_5(%arg0: i32) -> (i32, i32) {
    %c0_i32 = arith.constant 0 : i32
    %c0_i32_0 = arith.constant 0 : i32
    return %arg0, %c0_i32 : i32, i32
  }
}

</mosaic_0001>

<llo_original>
// kernel: deep_learning_model.1
$region0: #{deep_learning_model.1}
  #allocation0 [shape = 'u32[]', space=smem, size = 0x4, offset = 0x4, fixed_abs, tag = 'smem constant byte address 0x4 - core index']
  #allocation1 [shape = 'u32[144,128]{1,0:T(1,128)}', space=vmem, size = 0x12000, scoped, tag = 'internal scratch']
  %s0 = inlined_call_operand.vmem [shape: bf16[8,32], index: 0, kind: input, shape index: {}]
  %s1 = inlined_call_operand.vmem [shape: bf16[32,128], index: 1, kind: input, shape index: {}]
  %s2 = inlined_call_operand.vmem [shape: f32[1,128], index: 2, kind: input, shape index: {}]
  %s3 = inlined_call_operand.vmem [shape: bf16[128,2], index: 3, kind: input, shape index: {}]
  %s4 = inlined_call_operand.vmem [shape: f32[1,2], index: 4, kind: input, shape index: {}]
  %s5 = inlined_call_operand.vmem [shape: f32[8,2], index: 5, kind: output, shape index: {}]
  %s6 = sld [smem:[#allocation0]]
  $region30: #{deep_learning_model.1} parent=0
    _
  %s8 = ssub.s32 1, %s6
  %s9 = scalar_select 0, %s8, %s6
  // Predicated region
  $region2: #{deep_learning_model.1} parent=0 // pred_check
    _
  $region3: #{deep_learning_model.1} parent=0 // pred_check_branch
    %11 = sbr.rel (0) target = $region5
  $region4: #{deep_learning_model.1} parent=0 // pred_region
    _
  $region5: #{deep_learning_model.1} parent=0 // pred_fallthru
    _
  // Predicated region
  $region6: #{deep_learning_model.1} parent=0 // pred_check
    _
  $region7: #{deep_learning_model.1} parent=0 // pred_check_branch
    %13 = sbr.rel (0) target = $region9
  $region8: #{deep_learning_model.1} parent=0 // pred_region
    _
  $region9: #{deep_learning_model.1} parent=0 // pred_fallthru
    _
  // Predicated region
  $region10: #{deep_learning_model.1} parent=0 // pred_check
    _
  $region11: #{deep_learning_model.1} parent=0 // pred_check_branch
    %15 = sbr.rel (0) target = $region13
  $region12: #{deep_learning_model.1} parent=0 // pred_region
    _
  $region13: #{deep_learning_model.1} parent=0 // pred_fallthru
    _
  // Predicated region
  $region14: #{deep_learning_model.1} parent=0 // pred_check
    _
  $region15: #{deep_learning_model.1} parent=0 // pred_check_branch
    %17 = sbr.rel (0) target = $region17
  $region16: #{deep_learning_model.1} parent=0 // pred_region
    _
  $region17: #{deep_learning_model.1} parent=0 // pred_fallthru
    _
  // Predicated region
  $region18: #{deep_learning_model.1} parent=0 // pred_check
    _
  $region19: #{deep_learning_model.1} parent=0 // pred_check_branch
    %19 = sbr.rel (0) target = $region21
  $region20: #{deep_learning_model.1} parent=0 // pred_region
    _
  $region21: #{deep_learning_model.1} parent=0 // pred_fallthru
    _
  %v21 = vld [vmem:[%s0] sm:$0xf]
  %v22 = vld [vmem:[%s1] sm:$0xf]
  %v23 = vld [vmem:[%s1 + $0x4] sm:$0xf]
  %v24 = vld [vmem:[%s1 + $0x8] sm:$0xf]
  %v25 = vld [vmem:[%s1 + $0xc] sm:$0xf]
  %v26 = vld [vmem:[%s2] sm:$0x1]
  %v28 = vlaneseq
  %v29 = vshrl.u32 %v28, 7
  %v30 = vsub.s32 0, %v29
  %v31 = vrot.slane %v26, %v30
  %v37 = vunpack.c.l.b16 %v22
  %v38 = vunpack.c.l.b16 %v23
  %v39 = vunpack.c.l.b16 %v24
  %v40 = vunpack.c.l.b16 %v25
  %v41 = vpack.c.b16 %v38, %v37
  %v42 = vpack.c.b16 %v40, %v39
  %vm45 = vcmask 261120
  %v47 = vsel %vm45, %v21, 0
  %49 = vmatprep.subr.bf16.mxu0 0
  %50 = vmatpush1.bf16.msra.mxu0 %v41
  %51 = vmatprep.subr.bf16.mxu0 0
  %52 = vmatpush1.bf16.msra.mxu0 %v42
  %53 = vmatprep.subr.bf16.mxu0 0
  %54 = vmatpush1.bf16.msra.mxu0 0
  %55 = vmatprep.subr.bf16.mxu0 0
  %56 = vmatpush1.bf16.msra.mxu0 0
  %57 = vmatprep.subr.bf16.mxu0 0
  %58 = vmatpush1.bf16.msra.mxu0 0
  %59 = vmatprep.subr.bf16.mxu0 0
  %60 = vmatpush1.bf16.msra.mxu0 0
  %61 = vmatprep.subr.bf16.mxu0 0
  %62 = vmatpush1.bf16.msra.mxu0 0
  %63 = vmatprep.subr.bf16.mxu0 0
  %64 = vmatpush1.bf16.msra.mxu0 0
  %65 = vmatprep.subr.bf16.mxu0 0
  %66 = vmatpush1.bf16.msra.mxu0 0
  %67 = vmatprep.subr.bf16.mxu0 0
  %68 = vmatpush1.bf16.msra.mxu0 0
  %69 = vmatprep.subr.bf16.mxu0 0
  %70 = vmatpush1.bf16.msra.mxu0 0
  %71 = vmatprep.subr.bf16.mxu0 0
  %72 = vmatpush1.bf16.msra.mxu0 0
  %73 = vmatprep.subr.bf16.mxu0 0
  %74 = vmatpush1.bf16.msra.mxu0 0
  %75 = vmatprep.subr.bf16.mxu0 0
  %76 = vmatpush1.bf16.msra.mxu0 0
  %77 = vmatprep.subr.bf16.mxu0 0
  %78 = vmatpush1.bf16.msra.mxu0 0
  %79 = vmatprep.subr.bf16.mxu0 0
  %80 = vmatpush1.bf16.msra.mxu0 0
  %81 = vmatprep.mubr.bf16.mxu0 0
  %82 = vmatmul.mubr.bf16.gmra.mrb[0].mxu0 %v47
  %v83 = vpop.f32.mrb[0].mxu0
  %v84 = vadd.f32 %v31, %v83
  %v85 = vpop.f32.mrb[0].mxu0
  %v86 = vpop.f32.mrb[0].mxu0
  %v87 = vpop.f32.mrb[0].mxu0
  %88 = vdwg.mxu0
  %v89 = vmax.f32 %v84, 0.0
  %v90 = vpack.c.bf16 %v89, %v89
  %v91 = vld [vmem:[%s3] sm:$0xf]
  %v92 = vld [vmem:[%s3 + $0x4] sm:$0xf]
  %v93 = vld [vmem:[%s3 + $0x8] sm:$0xf]
  %v94 = vld [vmem:[%s3 + $0xc] sm:$0xf]
  %v95 = vld [vmem:[%s3 + $0x10] sm:$0xf]
  %v96 = vld [vmem:[%s3 + $0x14] sm:$0xf]
  %v97 = vld [vmem:[%s3 + $0x18] sm:$0xf]
  %v98 = vld [vmem:[%s3 + $0x1c] sm:$0xf]
  %v99 = vld [vmem:[%s3 + $0x20] sm:$0xf]
  %v100 = vld [vmem:[%s3 + $0x24] sm:$0xf]
  %v101 = vld [vmem:[%s3 + $0x28] sm:$0xf]
  %v102 = vld [vmem:[%s3 + $0x2c] sm:$0xf]
  %v103 = vld [vmem:[%s3 + $0x30] sm:$0xf]
  %v104 = vld [vmem:[%s3 + $0x34] sm:$0xf]
  %v105 = vld [vmem:[%s3 + $0x38] sm:$0xf]
  %v106 = vld [vmem:[%s3 + $0x3c] sm:$0xf]
  %v107 = vld [vmem:[%s4] sm:$0x1]
  %v109 = vlaneseq
  %v110 = vshrl.u32 %v109, 7
  %v111 = vsub.s32 0, %v110
  %v112 = vrot.slane %v107, %v111
  %v130 = vunpack.c.l.b16 %v91
  %v131 = vunpack.c.l.b16 %v92
  %v132 = vunpack.c.l.b16 %v93
  %v133 = vunpack.c.l.b16 %v94
  %v134 = vunpack.c.l.b16 %v95
  %v135 = vunpack.c.l.b16 %v96
  %v136 = vunpack.c.l.b16 %v97
  %v137 = vunpack.c.l.b16 %v98
  %v138 = vunpack.c.l.b16 %v99
  %v139 = vunpack.c.l.b16 %v100
  %v140 = vunpack.c.l.b16 %v101
  %v141 = vunpack.c.l.b16 %v102
  %v142 = vunpack.c.l.b16 %v103
  %v143 = vunpack.c.l.b16 %v104
  %v144 = vunpack.c.l.b16 %v105
  %v145 = vunpack.c.l.b16 %v106
  %v146 = vpack.c.b16 %v131, %v130
  %v147 = vpack.c.b16 %v133, %v132
  %v148 = vpack.c.b16 %v135, %v134
  %v149 = vpack.c.b16 %v137, %v136
  %v150 = vpack.c.b16 %v139, %v138
  %v151 = vpack.c.b16 %v141, %v140
  %v152 = vpack.c.b16 %v143, %v142
  %v153 = vpack.c.b16 %v145, %v144
  %162 = vmatprep.subr.bf16.mxu0 0
  %163 = vmatpush1.bf16.msra.mxu0 %v146
  %164 = vmatprep.subr.bf16.mxu0 0
  %165 = vmatpush1.bf16.msra.mxu0 %v147
  %166 = vmatprep.subr.bf16.mxu0 0
  %167 = vmatpush1.bf16.msra.mxu0 %v148
  %168 = vmatprep.subr.bf16.mxu0 0
  %169 = vmatpush1.bf16.msra.mxu0 %v149
  %170 = vmatprep.subr.bf16.mxu0 0
  %171 = vmatpush1.bf16.msra.mxu0 %v150
  %172 = vmatprep.subr.bf16.mxu0 0
  %173 = vmatpush1.bf16.msra.mxu0 %v151
  %174 = vmatprep.subr.bf16.mxu0 0
  %175 = vmatpush1.bf16.msra.mxu0 %v152
  %176 = vmatprep.subr.bf16.mxu0 0
  %177 = vmatpush1.bf16.msra.mxu0 %v153
  %178 = vmatprep.subr.bf16.mxu0 0
  %179 = vmatpush1.bf16.msra.mxu0 0
  %180 = vmatprep.subr.bf16.mxu0 0
  %181 = vmatpush1.bf16.msra.mxu0 0
  %182 = vmatprep.subr.bf16.mxu0 0
  %183 = vmatpush1.bf16.msra.mxu0 0
  %184 = vmatprep.subr.bf16.mxu0 0
  %185 = vmatpush1.bf16.msra.mxu0 0
  %186 = vmatprep.subr.bf16.mxu0 0
  %187 = vmatpush1.bf16.msra.mxu0 0
  %188 = vmatprep.subr.bf16.mxu0 0
  %189 = vmatpush1.bf16.msra.mxu0 0
  %190 = vmatprep.subr.bf16.mxu0 0
  %191 = vmatpush1.bf16.msra.mxu0 0
  %192 = vmatprep.subr.bf16.mxu0 0
  %193 = vmatpush1.bf16.msra.mxu0 0
  %194 = vmatprep.mubr.bf16.mxu0 0
  %195 = vmatmul.mubr.bf16.gmra.mrb[0].mxu0 %v90
  %v196 = vpop.f32.mrb[0].mxu0
  %v197 = vadd.f32 %v112, %v196
  %v198 = vpop.f32.mrb[0].mxu0
  %v199 = vpop.f32.mrb[0].mxu0
  %v200 = vpop.f32.mrb[0].mxu0
  %201 = vdwg.mxu0
  %vm202 = vcmask 15360
  %v203 = vsel %vm202, %v197, -inf
  %204 = vmax.xlane.f32.xlu0 %v203
  %v205 = vpop.xlane.xlu0 %204
  %v206 = vsub.f32 %v197, %v205
  %v207 = vmul.f32 %v206, 1.442695
  %v208 = vpow.pop %v207
  %v209 = vsel %vm202, %v208, 0.0
  %210 = vadd.xlane.f32.xlu0 %v209
  %v211 = vpop.xlane.xlu0 %210
  %v212 = vrcp.pop %v211
  %v213 = vmul.f32 %v208, %v212
  %214 = vst.msk [vmem:[%s5] sm:$0xff] %vm202, %v213
  // Predicated region
  $region22: #{deep_learning_model.1} parent=0 // pred_check
    _
  $region23: #{deep_learning_model.1} parent=0 // pred_check_branch
    %216 = sbr.rel (0) target = $region25
  $region24: #{deep_learning_model.1} parent=0 // pred_region
    _
  $region25: #{deep_learning_model.1} parent=0 // pred_fallthru
    _
  // Predicated region
  $region26: #{deep_learning_model.1} parent=0 // pred_check
    _
  $region27: #{deep_learning_model.1} parent=0 // pred_check_branch
    %218 = sbr.rel (0) target = $region29
  $region28: #{deep_learning_model.1} parent=0 // pred_region
    _
  $region29: #{deep_learning_model.1} parent=0 // pred_fallthru
    _

</llo_original>
